<compile_context>
chip_gen: v6e
topology: v6e:2x2x1
jax: 0.10.0
libtpu: 0.0.40
codegen_flags: <defaults>
</compile_context>

<pallas_src>
import functools
import numpy as np

import jax
import jax.numpy as jnp
from jax import lax
from jax.experimental import pallas as pl
from jax.experimental.pallas import tpu as pltpu


def _ring_attractor_kernel(dts_ref, ext_ref, s0_ref, w_big_ref,
                           re_out_ref, sup_src_ref, rmax_ref, sup_dst_ref,
                           *, steps: int, n_exc: int):
    f32 = jnp.float32
    N = n_exc
    mm_dtype = w_big_ref.dtype

    w_big = w_big_ref[...]          # (N_tot, N_tot) fused block weight
    ext_g = ext_ref[...]            # (N_tot, B): g_input*ext^T for exc rows, 0 for inh rows
    dts = dts_ref[...]              # (N_tot, 1): dt/tau_e (exc rows) / dt/tau_i (inh rows)

    row_e = lax.broadcasted_iota(jnp.int32, (N, 1), 0)     # ring index (sublanes)

    def upd_row(cur, lm1, lm2, lm3, rmax):
        maxn = jnp.maximum(jnp.maximum(jnp.maximum(lm1, lm2), lm3), rmax)
        return jnp.where(cur < f32(0.7) * maxn, cur * f32(0.3), cur)

    def wta(act):
        """_apply_multiple_winner_take_all on (N, B) activity (ring on sublanes)."""
        max_act = jnp.max(act, axis=0, keepdims=True)        # (1, B)
        thr = max_act * f32(0.25)
        sup0 = jnp.where(act > thr, act, act * f32(0.05))

        if N > 5:
            # Right-neighbour max over the ORIGINAL values, valid for rows
            # 0..N-4 (their right neighbours i+1..i+3 are not yet updated when
            # row i is processed).  The 3 wrap rows are handled in the tail,
            # so no circular rotation is needed here at all.
            rmax_valid = jnp.maximum(jnp.maximum(sup0[1:N - 2, :],
                                                 sup0[2:N - 1, :]),
                                     sup0[3:N, :])           # (N-3, B)
            sup_src_ref[...] = sup0
            rmax_ref[0:N - 3, :] = rmax_valid

            # --- head rows 0..2: left neighbours wrap onto ORIGINAL rows N-1..N-3
            lm1 = sup0[N - 1:N, :]
            lm2 = sup0[N - 2:N - 1, :]
            lm3 = sup0[N - 3:N - 2, :]
            firsts = []
            for i in range(3):
                new = upd_row(sup0[i:i + 1, :], lm1, lm2, lm3,
                              rmax_valid[i:i + 1, :])
                sup_dst_ref[i:i + 1, :] = new
                firsts.append(new)
                lm1, lm2, lm3 = new, lm1, lm2
            f0, f1, f2 = firsts

            # --- middle rows 3..N-4: register-carried left window; per
            # iteration one dynamic row load of the original value, one of the
            # precomputed right max and one lane-dense row store — no
            # store->load dependency across iterations.
            def body(i, carry):
                lm1, lm2, lm3 = carry
                cur = sup_src_ref[pl.ds(i, 1), :]
                rmax = rmax_ref[pl.ds(i, 1), :]
                new = upd_row(cur, lm1, lm2, lm3, rmax)
                sup_dst_ref[pl.ds(i, 1), :] = new
                return (new, lm1, lm2)

            lm1, lm2, lm3 = lax.fori_loop(3, N - 3, body, (lm1, lm2, lm3))

            # --- tail rows N-3..N-1: right neighbours wrap onto the UPDATED
            # rows 0..2 (carried in vregs as f0,f1,f2).
            tail_rmax = (
                jnp.maximum(jnp.maximum(sup0[N - 2:N - 1, :],
                                        sup0[N - 1:N, :]), f0),
                jnp.maximum(jnp.maximum(sup0[N - 1:N, :], f0), f1),
                jnp.maximum(jnp.maximum(f0, f1), f2),
            )
            for k, i in enumerate(range(N - 3, N)):
                new = upd_row(sup0[i:i + 1, :], lm1, lm2, lm3, tail_rmax[k])
                sup_dst_ref[i:i + 1, :] = new
                lm1, lm2, lm3 = new, lm1, lm2

            sup = sup_dst_ref[...]
        else:
            sup = sup0

        # std-based far-from-peak suppression (torch.std is unbiased /(N-1));
        # two-pass variance for fidelity near the branch threshold.
        mean = jnp.sum(sup, axis=0, keepdims=True) * f32(1.0 / N)
        dev = sup - mean
        var = jnp.sum(dev * dev, axis=0, keepdims=True) * f32(1.0 / (N - 1))
        cond_std = jnp.sqrt(var) > f32(0.5) * mean            # (1, B)
        maxv = jnp.max(sup, axis=0, keepdims=True)
        peak = jnp.min(jnp.where(sup == maxv, row_e, N), axis=0, keepdims=True)
        diff = jnp.abs(row_e - peak)
        dist = jnp.minimum(diff, N - diff)
        factor = jnp.where((row_e != peak) & (dist > 3), f32(0.1), f32(1.0))
        sup = jnp.where(cond_std, sup * factor, sup)

        # total-activity renormalisation (target_total=0.8; rescale if > 1.6)
        total = jnp.sum(sup, axis=0, keepdims=True)
        scale = jnp.where(total > f32(1.6),
                          f32(0.8) / jnp.maximum(total, f32(1e-30)), f32(1.0))
        sup = sup * scale

        # if max(activity) < 1e-6 the WTA returns the activity unchanged
        return jnp.where(max_act < f32(1e-6), act, sup)

    def one_step(s):
        # One fused block matmul per step: rows [:N] give
        # g_ee*W_EE@r_e - (g_global + g_local/N)*sum(r_e) + g_ie*W_IE^T@r_i,
        # rows [N:] give g_ei*W_EI^T@r_e.
        inp = jnp.dot(w_big, s.astype(mm_dtype),
                      preferred_element_type=jnp.float32) + ext_g
        # TODO(synk): eval-mode stochastic noise injection (torch.rand(1) < 0.1
        # branch) is non-deterministic and omitted here.
        s = s + dts * (jnp.maximum(inp, f32(0.0)) - s)
        s = jnp.maximum(s, f32(0.0))
        r_e = wta(s[:N, :])
        return jnp.concatenate([r_e, s[N:, :]], axis=0)

    s = s0_ref[...]
    if steps <= 4:                               # small counts: static unroll
        for _ in range(steps):
            s = one_step(s)
    else:                                        # large counts: compact body
        s = lax.fori_loop(0, steps, lambda _, c: one_step(c), s)
    re_out_ref[...] = s[:N, :]


def _build_ring_weights(preferred_dirs, sigma):
    """JAX port of _create_optimized_ring_weights (runs outside the kernel)."""
    ang = preferred_dirs.astype(jnp.float32)
    n = ang.shape[0]
    d = ang[None, :] - ang[:, None]              # d[i, j] = angles[j] - angles[i]
    d = jnp.arctan2(jnp.sin(d), jnp.cos(d))
    w = jnp.exp(-0.5 * (d / sigma) ** 2)
    w = jnp.where(jnp.eye(n, dtype=bool), 0.0, w)        # fill_diagonal_(0)
    row_sums = jnp.sum(w, axis=1, keepdims=True) + 1e-8
    w = (w / row_sums) * 0.7
    return w * jnp.exp(-0.1 * jnp.abs(d))


def init_params(n_exc, n_inh, key):
    """Deterministic parameter init mirroring the module's __init__ +
    apply_biological_constraints (no-ops at default values, kept for fidelity)."""
    p = dict(tau_e=15.0, tau_i=8.0, dt=0.1, sigma_ee=0.2, g_ee=0.5, g_ei=2.5,
             g_ie=5.0, g_global=1.0, g_local_competition=0.5, g_input=1.5)
    W_EI = jnp.clip(0.4 + 0.1 * jax.random.normal(key, (n_exc, n_inh),
                                                  jnp.float32), 0.0, 1.0)
    W_IE = jnp.full((n_inh, n_exc), -0.4, jnp.float32)
    preferred_dirs = jnp.linspace(0.0, 2.0 * np.pi, n_exc, dtype=jnp.float32)

    # apply_biological_constraints
    if p['g_ie'] < p['g_ee'] * 6.0:
        p['g_ie'] = p['g_ee'] * 6.0
    clamp = lambda v, lo, hi: float(min(max(v, lo), hi))
    p['g_ee'] = clamp(p['g_ee'], 0.2, 1.0)
    p['g_ie'] = clamp(p['g_ie'], 3.0, 10.0)
    p['g_ei'] = clamp(p['g_ei'], 1.5, 4.0)
    p['sigma_ee'] = clamp(p['sigma_ee'], 0.1, 0.35)
    p['g_global'] = clamp(p['g_global'], 0.5, 2.0)
    p['tau_e'] = clamp(p['tau_e'], 10.0, 25.0)
    p['tau_i'] = clamp(p['tau_i'], 5.0, 15.0)
    p['g_input'] = clamp(p['g_input'], 0.5, 3.0)
    W_IE = jnp.minimum(W_IE, -0.1)
    W_EI = jnp.clip(W_EI, 0.0, 1.0)
    return p, W_EI, W_IE, preferred_dirs


def enhanced_single_peak_forward(external_input, h, params, W_EI, W_IE,
                                 preferred_dirs, steps=1):
    """Batch-mode forward: external_input [B, n_exc], hidden state h [B, n_exc].
    Since h is provided, r_i starts at zeros (matches the PyTorch code path)."""
    external_input = external_input.astype(jnp.float32)
    h = h.astype(jnp.float32)
    B, n_exc = external_input.shape
    n_inh = W_EI.shape[1]
    n_tot = n_exc + n_inh

    # --- one-time weight preparation (hoisted out of the kernel) -----------
    #   W_big = [[ g_ee*W_EE - (g_global + g_local/N) ,  g_ie*W_IE^T ],
    #            [ g_ei*W_EI^T                        ,  0           ]]
    w_ee = _build_ring_weights(preferred_dirs, params['sigma_ee'])
    rank1 = params['g_global'] + params['g_local_competition'] / n_exc
    top = jnp.concatenate(
        [params['g_ee'] * w_ee - rank1,
         params['g_ie'] * W_IE.astype(jnp.float32).T], axis=1)
    bot = jnp.concatenate(
        [params['g_ei'] * W_EI.astype(jnp.float32).T,
         jnp.zeros((n_inh, n_inh), jnp.float32)], axis=1)
    mm_dtype = jnp.bfloat16 if n_tot >= 512 else jnp.float32   # MXU dtype for big nets
    w_big = jnp.concatenate([top, bot], axis=0).astype(mm_dtype)   # (n_tot, n_tot)

    # --- transposed layout: neuron axis on sublanes, batch on lanes --------
    ext_t = jnp.concatenate(
        [params['g_input'] * external_input.T,
         jnp.zeros((n_inh, B), jnp.float32)], axis=0)               # (n_tot, B)
    s0 = jnp.concatenate([h.T, jnp.zeros((n_inh, B), jnp.float32)], axis=0)
    dts = jnp.concatenate(
        [jnp.full((n_exc, 1), params['dt'] / params['tau_e'], jnp.float32),
         jnp.full((n_inh, 1), params['dt'] / params['tau_i'], jnp.float32)],
        axis=0)                                                     # (n_tot, 1)

    # Batch block: fill the 128-lane axis when possible; one block otherwise.
    if B > 128 and B % 128 == 0:
        b_blk = 128
    else:
        b_blk = B
    grid = (B // b_blk,)

    batched = lambda i: (0, i)
    fixed = lambda i: (0, 0)

    kernel = functools.partial(_ring_attractor_kernel, steps=steps,
                               n_exc=n_exc)

    cp_kwargs = dict(dimension_semantics=("parallel",))
    # Raise the scoped-VMEM limit only when the (double-buffered) fused weight
    # actually needs it (large n_exc); demo shapes keep the default.
    if 2 * w_big.size * w_big.dtype.itemsize > 24 * 1024 * 1024:
        cp_kwargs['vmem_limit_bytes'] = 64 * 1024 * 1024

    out_t = pl.pallas_call(
        kernel,
        out_shape=jax.ShapeDtypeStruct((n_exc, B), jnp.float32),
        grid=grid,
        in_specs=[
            pl.BlockSpec((n_tot, 1), fixed),         # dt/tau per row
            pl.BlockSpec((n_tot, b_blk), batched),   # g_input * ext^T (inh rows zero)
            pl.BlockSpec((n_tot, b_blk), batched),   # s0 = [h^T ; 0]
            pl.BlockSpec((n_tot, n_tot), fixed),     # fused block weight
        ],
        out_specs=pl.BlockSpec((n_exc, b_blk), batched),
        scratch_shapes=[pltpu.VMEM((n_exc, b_blk), jnp.float32),    # WTA originals
                        pltpu.VMEM((n_exc, b_blk), jnp.float32),    # right-neighbour max
                        pltpu.VMEM((n_exc, b_blk), jnp.float32)],   # WTA updated rows
        compiler_params=pltpu.CompilerParams(**cp_kwargs),
    )(dts, ext_t, s0, w_big)

    return out_t.T


def _forward_reference(external_input, h, params, W_EI, W_IE, preferred_dirs,
                       steps=1):
    """Pure-NumPy port of the PyTorch forward (eval path, noise branch off)."""
    x = np.asarray(external_input, np.float64)
    r_e = np.asarray(h, np.float64).copy()
    W_EI = np.asarray(W_EI, np.float64)
    W_IE = np.asarray(W_IE, np.float64)
    ang = np.asarray(preferred_dirs, np.float64)
    B, N = r_e.shape
    n_inh = W_EI.shape[1]
    r_i = np.zeros((B, n_inh))

    d = ang[None, :] - ang[:, None]
    d = np.arctan2(np.sin(d), np.cos(d))
    W = np.exp(-0.5 * (d / params['sigma_ee']) ** 2)
    np.fill_diagonal(W, 0.0)
    W = W / (W.sum(axis=1, keepdims=True) + 1e-8) * 0.7
    W_EE = W * np.exp(-0.1 * np.abs(d))

    def wta(a):
        a = a.copy()
        if a.max() < 1e-6:
            return a
        thr = a.max() * 0.25
        sup = np.where(a > thr, a, a * 0.05)
        n = len(sup)
        if n > 5:
            for i in range(n):
                mn = max(sup[(i + o) % n] for o in (-3, -2, -1, 1, 2, 3))
                if sup[i] < mn * 0.7:
                    sup[i] *= 0.3
        if sup.std(ddof=1) > sup.mean() * 0.5:
            p = int(np.argmax(sup))
            for i in range(n):
                if i != p and min(abs(i - p), n - abs(i - p)) > 3:
                    sup[i] *= 0.1
        total = sup.sum()
        if total > 0 and total > 1.6:
            sup = sup * (0.8 / total)
        return sup

    for _ in range(steps):
        inp_e = np.zeros_like(r_e)
        inp_i = np.zeros_like(r_i)
        for b in range(B):
            ee = params['g_ee'] * (W_EE @ r_e[b])
            ie = params['g_ie'] * (W_IE.T @ r_i[b])
            glob = params['g_global'] * r_e[b].sum()
            loc = params['g_local_competition'] * r_e[b].mean()
            inp_e[b] = ee + ie - glob - loc + params['g_input'] * x[b]
            inp_i[b] = params['g_ei'] * (W_EI.T @ r_e[b])
        r_e = r_e + params['dt'] * (-r_e + np.maximum(inp_e, 0.0)) / params['tau_e']
        r_i = r_i + params['dt'] * (-r_i + np.maximum(inp_i, 0.0)) / params['tau_i']
        r_e = np.maximum(r_e, 0.0)
        r_i = np.maximum(r_i, 0.0)
        r_e = np.stack([wta(r_e[b]) for b in range(B)])
    return r_e


if __name__ == "__main__":
    key = jax.random.PRNGKey(0)
    kw, ke, kh = jax.random.split(key, 3)

    B, n_exc, n_inh = 2, 32, 16
    params, W_EI, W_IE, pref = init_params(n_exc, n_inh, kw)

    external_input = 0.5 * jax.nn.relu(
        jax.random.normal(ke, (B, n_exc), jnp.float32))
    h = 0.1 * jax.nn.relu(jax.random.normal(kh, (B, n_exc), jnp.float32))

    out = enhanced_single_peak_forward(external_input, h, params, W_EI, W_IE,
                                       pref, steps=1)
    out = jax.block_until_ready(out)

    assert out.shape == (B, n_exc)
    assert bool(jnp.all(jnp.isfinite(out)))

    ref = _forward_reference(np.asarray(external_input), np.asarray(h), params,
                             np.asarray(W_EI), np.asarray(W_IE),
                             np.asarray(pref), steps=1)
    assert np.allclose(np.asarray(out), ref, rtol=1e-2, atol=1e-4), (
        float(np.max(np.abs(np.asarray(out) - ref))))

    print("KERNEL_OK")
</pallas_src>

<mosaic_0001>
module attributes {stable_mosaic.version = 11 : i64} {
  func.func @_ring_attractor_kernel(%arg0: i32, %arg1: memref<48x1xf32, #tpu.memory_space<vmem>>, %arg2: memref<48x2xf32, #tpu.memory_space<vmem>>, %arg3: memref<48x2xf32, #tpu.memory_space<vmem>>, %arg4: memref<48x48xf32, #tpu.memory_space<vmem>>, %arg5: memref<32x2xf32, #tpu.memory_space<vmem>>, %arg6: memref<32x2xf32, #tpu.memory_space<vmem>>, %arg7: memref<32x2xf32, #tpu.memory_space<vmem>>, %arg8: memref<32x2xf32, #tpu.memory_space<vmem>>) attributes {dimension_semantics = [#tpu.dimension_semantics<parallel>], iteration_bounds = array<i64: 1>, scalar_prefetch = 0 : i64, scratch_operands = 3 : i64, tpu.core_type = #tpu.core_type<tc>, window_params = [{pipeline_mode = #tpu.pipeline_mode<synchronous>, transform_indices = @transform_0, window_bounds = array<i64: 48, 1>}, {transform_indices = @transform_1, window_bounds = array<i64: 48, 2>}, {transform_indices = @transform_2, window_bounds = array<i64: 48, 2>}, {pipeline_mode = #tpu.pipeline_mode<synchronous>, transform_indices = @transform_3, window_bounds = array<i64: 48, 48>}, {transform_indices = @transform_4, window_bounds = array<i64: 32, 2>}]} {
    %c0 = arith.constant 0 : index
    %c0_0 = arith.constant 0 : index
    %0 = vector.load %arg4[%c0, %c0_0] : memref<48x48xf32, #tpu.memory_space<vmem>>, vector<48x48xf32>
    %c0_1 = arith.constant 0 : index
    %c0_2 = arith.constant 0 : index
    %1 = vector.load %arg2[%c0_1, %c0_2] : memref<48x2xf32, #tpu.memory_space<vmem>>, vector<48x2xf32>
    %c0_3 = arith.constant 0 : index
    %c0_4 = arith.constant 0 : index
    %2 = vector.load %arg1[%c0_3, %c0_4] : memref<48x1xf32, #tpu.memory_space<vmem>>, vector<48x1xf32>
    %3 = tpu.iota {dimensions = array<i32: 0>} : vector<32x1xi32>
    %c0_5 = arith.constant 0 : index
    %c0_6 = arith.constant 0 : index
    %4 = vector.load %arg3[%c0_5, %c0_6] : memref<48x2xf32, #tpu.memory_space<vmem>>, vector<48x2xf32>
    %cst = arith.constant dense<0.000000e+00> : vector<48x2xf32>
    %5 = tpu.matmul %0, %4, %cst {dimension_numbers = #tpu.dot_dimension_numbers<[1], [0], [0], [1], [0, 0, 1, 1], [], []>} : vector<48x48xf32>, vector<48x2xf32>, vector<48x2xf32> -> vector<48x2xf32>
    %6 = arith.addf %5, %1 : vector<48x2xf32>
    %cst_7 = arith.constant 0.000000e+00 : f32
    %7 = vector.broadcast %cst_7 : f32 to vector<48x2xf32>
    %8 = arith.maximumf %6, %7 : vector<48x2xf32>
    %9 = arith.subf %8, %4 : vector<48x2xf32>
    %10 = vector.broadcast %2 : vector<48x1xf32> to vector<48x2xf32>
    %11 = arith.mulf %10, %9 : vector<48x2xf32>
    %12 = arith.addf %4, %11 : vector<48x2xf32>
    %cst_8 = arith.constant 0.000000e+00 : f32
    %13 = vector.broadcast %cst_8 : f32 to vector<48x2xf32>
    %14 = arith.maximumf %12, %13 : vector<48x2xf32>
    %15 = vector.extract_strided_slice %14 {offsets = [0, 0], sizes = [32, 2], strides = [1, 1]} : vector<48x2xf32> to vector<32x2xf32>
    %cst_9 = arith.constant dense<0xFF800000> : vector<2xf32>
    %16 = vector.multi_reduction <maximumf>, %15, %cst_9 [0] : vector<32x2xf32> to vector<2xf32>
    %17 = vector.shape_cast %16 : vector<2xf32> to vector<1x2xf32>
    %cst_10 = arith.constant 2.500000e-01 : f32
    %18 = vector.broadcast %cst_10 : f32 to vector<1x2xf32>
    %19 = arith.mulf %17, %18 : vector<1x2xf32>
    %20 = vector.broadcast %19 : vector<1x2xf32> to vector<32x2xf32>
    %21 = arith.cmpf ogt, %15, %20 : vector<32x2xf32>
    %cst_11 = arith.constant 5.000000e-02 : f32
    %22 = vector.broadcast %cst_11 : f32 to vector<32x2xf32>
    %23 = arith.mulf %15, %22 : vector<32x2xf32>
    %24 = arith.select %21, %15, %23 : vector<32x2xi1>, vector<32x2xf32>
    %25 = vector.extract_strided_slice %24 {offsets = [1, 0], sizes = [29, 2], strides = [1, 1]} : vector<32x2xf32> to vector<29x2xf32>
    %26 = vector.extract_strided_slice %24 {offsets = [2, 0], sizes = [29, 2], strides = [1, 1]} : vector<32x2xf32> to vector<29x2xf32>
    %27 = arith.maximumf %25, %26 : vector<29x2xf32>
    %28 = vector.extract_strided_slice %24 {offsets = [3, 0], sizes = [29, 2], strides = [1, 1]} : vector<32x2xf32> to vector<29x2xf32>
    %29 = arith.maximumf %27, %28 : vector<29x2xf32>
    %c0_12 = arith.constant 0 : index
    %c0_13 = arith.constant 0 : index
    %30 = vector.load %arg6[%c0_12, %c0_13] : memref<32x2xf32, #tpu.memory_space<vmem>>, vector<32x2xf32>
    tpu.vector_store %arg6[%c0_12, %c0_13], %24 {strides = array<i32>} : memref<32x2xf32, #tpu.memory_space<vmem>>, vector<32x2xf32>,
    %c0_14 = arith.constant 0 : index
    %c0_15 = arith.constant 0 : index
    %31 = vector.load %arg7[%c0_14, %c0_15] : memref<32x2xf32, #tpu.memory_space<vmem>>, vector<29x2xf32>
    tpu.vector_store %arg7[%c0_14, %c0_15], %29 {strides = array<i32>} : memref<32x2xf32, #tpu.memory_space<vmem>>, vector<29x2xf32>,
    %32 = vector.extract_strided_slice %24 {offsets = [31, 0], sizes = [1, 2], strides = [1, 1]} : vector<32x2xf32> to vector<1x2xf32>
    %33 = vector.extract_strided_slice %24 {offsets = [30, 0], sizes = [1, 2], strides = [1, 1]} : vector<32x2xf32> to vector<1x2xf32>
    %34 = vector.extract_strided_slice %24 {offsets = [29, 0], sizes = [1, 2], strides = [1, 1]} : vector<32x2xf32> to vector<1x2xf32>
    %35 = vector.extract_strided_slice %24 {offsets = [0, 0], sizes = [1, 2], strides = [1, 1]} : vector<32x2xf32> to vector<1x2xf32>
    %36 = vector.extract_strided_slice %29 {offsets = [0, 0], sizes = [1, 2], strides = [1, 1]} : vector<29x2xf32> to vector<1x2xf32>
    %37 = arith.maximumf %32, %33 : vector<1x2xf32>
    %38 = arith.maximumf %37, %34 : vector<1x2xf32>
    %39 = arith.maximumf %38, %36 : vector<1x2xf32>
    %cst_16 = arith.constant 0.699999988 : f32
    %40 = vector.broadcast %cst_16 : f32 to vector<1x2xf32>
    %41 = arith.mulf %40, %39 : vector<1x2xf32>
    %42 = arith.cmpf olt, %35, %41 : vector<1x2xf32>
    %cst_17 = arith.constant 3.000000e-01 : f32
    %43 = vector.broadcast %cst_17 : f32 to vector<1x2xf32>
    %44 = arith.mulf %35, %43 : vector<1x2xf32>
    %45 = arith.select %42, %44, %35 : vector<1x2xi1>, vector<1x2xf32>
    %c0_18 = arith.constant 0 : index
    %c0_19 = arith.constant 0 : index
    %46 = vector.load %arg8[%c0_18, %c0_19] : memref<32x2xf32, #tpu.memory_space<vmem>>, vector<1x2xf32>
    tpu.vector_store %arg8[%c0_18, %c0_19], %45 {strides = array<i32>} : memref<32x2xf32, #tpu.memory_space<vmem>>, vector<1x2xf32>,
    %47 = vector.extract_strided_slice %24 {offsets = [1, 0], sizes = [1, 2], strides = [1, 1]} : vector<32x2xf32> to vector<1x2xf32>
    %48 = vector.extract_strided_slice %29 {offsets = [1, 0], sizes = [1, 2], strides = [1, 1]} : vector<29x2xf32> to vector<1x2xf32>
    %49 = arith.maximumf %45, %32 : vector<1x2xf32>
    %50 = arith.maximumf %49, %33 : vector<1x2xf32>
    %51 = arith.maximumf %50, %48 : vector<1x2xf32>
    %cst_20 = arith.constant 0.699999988 : f32
    %52 = vector.broadcast %cst_20 : f32 to vector<1x2xf32>
    %53 = arith.mulf %52, %51 : vector<1x2xf32>
    %54 = arith.cmpf olt, %47, %53 : vector<1x2xf32>
    %cst_21 = arith.constant 3.000000e-01 : f32
    %55 = vector.broadcast %cst_21 : f32 to vector<1x2xf32>
    %56 = arith.mulf %47, %55 : vector<1x2xf32>
    %57 = arith.select %54, %56, %47 : vector<1x2xi1>, vector<1x2xf32>
    %c1 = arith.constant 1 : index
    %c0_22 = arith.constant 0 : index
    %58 = vector.load %arg8[%c1, %c0_22] : memref<32x2xf32, #tpu.memory_space<vmem>>, vector<1x2xf32>
    tpu.vector_store %arg8[%c1, %c0_22], %57 {strides = array<i32>} : memref<32x2xf32, #tpu.memory_space<vmem>>, vector<1x2xf32>,
    %59 = vector.extract_strided_slice %24 {offsets = [2, 0], sizes = [1, 2], strides = [1, 1]} : vector<32x2xf32> to vector<1x2xf32>
    %60 = vector.extract_strided_slice %29 {offsets = [2, 0], sizes = [1, 2], strides = [1, 1]} : vector<29x2xf32> to vector<1x2xf32>
    %61 = arith.maximumf %57, %45 : vector<1x2xf32>
    %62 = arith.maximumf %61, %32 : vector<1x2xf32>
    %63 = arith.maximumf %62, %60 : vector<1x2xf32>
    %cst_23 = arith.constant 0.699999988 : f32
    %64 = vector.broadcast %cst_23 : f32 to vector<1x2xf32>
    %65 = arith.mulf %64, %63 : vector<1x2xf32>
    %66 = arith.cmpf olt, %59, %65 : vector<1x2xf32>
    %cst_24 = arith.constant 3.000000e-01 : f32
    %67 = vector.broadcast %cst_24 : f32 to vector<1x2xf32>
    %68 = arith.mulf %59, %67 : vector<1x2xf32>
    %69 = arith.select %66, %68, %59 : vector<1x2xi1>, vector<1x2xf32>
    %c2 = arith.constant 2 : index
    %c0_25 = arith.constant 0 : index
    %70 = vector.load %arg8[%c2, %c0_25] : memref<32x2xf32, #tpu.memory_space<vmem>>, vector<1x2xf32>
    tpu.vector_store %arg8[%c2, %c0_25], %69 {strides = array<i32>} : memref<32x2xf32, #tpu.memory_space<vmem>>, vector<1x2xf32>,
    %c3_i32 = arith.constant 3 : i32
    %c26_i32 = arith.constant 26 : i32
    %71 = arith.addi %c3_i32, %c26_i32 : i32
    %c1_i32 = arith.constant 1 : i32
    %72:3 = scf.for %arg9 = %c3_i32 to %71 step %c1_i32 iter_args(%arg10 = %69, %arg11 = %57, %arg12 = %45) -> (vector<1x2xf32>, vector<1x2xf32>, vector<1x2xf32>)  : i32 {
      %182 = arith.index_cast %arg9 : i32 to index
      %c0_57 = arith.constant 0 : index
      %183 = vector.load %arg6[%182, %c0_57] : memref<32x2xf32, #tpu.memory_space<vmem>>, vector<1x2xf32>
      %184 = arith.index_cast %arg9 : i32 to index
      %c0_58 = arith.constant 0 : index
      %185 = vector.load %arg7[%184, %c0_58] : memref<32x2xf32, #tpu.memory_space<vmem>>, vector<1x2xf32>
      %186 = arith.maximumf %arg10, %arg11 : vector<1x2xf32>
      %187 = arith.maximumf %186, %arg12 : vector<1x2xf32>
      %188 = arith.maximumf %187, %185 : vector<1x2xf32>
      %cst_59 = arith.constant 0.699999988 : f32
      %189 = vector.broadcast %cst_59 : f32 to vector<1x2xf32>
      %190 = arith.mulf %189, %188 : vector<1x2xf32>
      %191 = arith.cmpf olt, %183, %190 : vector<1x2xf32>
      %cst_60 = arith.constant 3.000000e-01 : f32
      %192 = vector.broadcast %cst_60 : f32 to vector<1x2xf32>
      %193 = arith.mulf %183, %192 : vector<1x2xf32>
      %194 = arith.select %191, %193, %183 : vector<1x2xi1>, vector<1x2xf32>
      %195 = arith.index_cast %arg9 : i32 to index
      %c0_61 = arith.constant 0 : index
      %196 = vector.load %arg8[%195, %c0_61] : memref<32x2xf32, #tpu.memory_space<vmem>>, vector<1x2xf32>
      tpu.vector_store %arg8[%195, %c0_61], %194 {strides = array<i32>} : memref<32x2xf32, #tpu.memory_space<vmem>>, vector<1x2xf32>,
      scf.yield %194, %arg10, %arg11 : vector<1x2xf32>, vector<1x2xf32>, vector<1x2xf32>
    }
    %c26_i32_26 = arith.constant 26 : i32
    %73 = vector.extract_strided_slice %24 {offsets = [30, 0], sizes = [1, 2], strides = [1, 1]} : vector<32x2xf32> to vector<1x2xf32>
    %74 = vector.extract_strided_slice %24 {offsets = [31, 0], sizes = [1, 2], strides = [1, 1]} : vector<32x2xf32> to vector<1x2xf32>
    %75 = arith.maximumf %73, %74 : vector<1x2xf32>
    %76 = arith.maximumf %75, %45 : vector<1x2xf32>
    %77 = vector.extract_strided_slice %24 {offsets = [31, 0], sizes = [1, 2], strides = [1, 1]} : vector<32x2xf32> to vector<1x2xf32>
    %78 = arith.maximumf %77, %45 : vector<1x2xf32>
    %79 = arith.maximumf %78, %57 : vector<1x2xf32>
    %80 = arith.maximumf %45, %57 : vector<1x2xf32>
    %81 = arith.maximumf %80, %69 : vector<1x2xf32>
    %82 = vector.extract_strided_slice %24 {offsets = [29, 0], sizes = [1, 2], strides = [1, 1]} : vector<32x2xf32> to vector<1x2xf32>
    %83 = arith.maximumf %72#0, %72#1 : vector<1x2xf32>
    %84 = arith.maximumf %83, %72#2 : vector<1x2xf32>
    %85 = arith.maximumf %84, %76 : vector<1x2xf32>
    %cst_27 = arith.constant 0.699999988 : f32
    %86 = vector.broadcast %cst_27 : f32 to vector<1x2xf32>
    %87 = arith.mulf %86, %85 : vector<1x2xf32>
    %88 = arith.cmpf olt, %82, %87 : vector<1x2xf32>
    %cst_28 = arith.constant 3.000000e-01 : f32
    %89 = vector.broadcast %cst_28 : f32 to vector<1x2xf32>
    %90 = arith.mulf %82, %89 : vector<1x2xf32>
    %91 = arith.select %88, %90, %82 : vector<1x2xi1>, vector<1x2xf32>
    %c29 = arith.constant 29 : index
    %c0_29 = arith.constant 0 : index
    %92 = vector.load %arg8[%c29, %c0_29] : memref<32x2xf32, #tpu.memory_space<vmem>>, vector<1x2xf32>
    tpu.vector_store %arg8[%c29, %c0_29], %91 {strides = array<i32>} : memref<32x2xf32, #tpu.memory_space<vmem>>, vector<1x2xf32>,
    %93 = vector.extract_strided_slice %24 {offsets = [30, 0], sizes = [1, 2], strides = [1, 1]} : vector<32x2xf32> to vector<1x2xf32>
    %94 = arith.maximumf %91, %72#0 : vector<1x2xf32>
    %95 = arith.maximumf %94, %72#1 : vector<1x2xf32>
    %96 = arith.maximumf %95, %79 : vector<1x2xf32>
    %cst_30 = arith.constant 0.699999988 : f32
    %97 = vector.broadcast %cst_30 : f32 to vector<1x2xf32>
    %98 = arith.mulf %97, %96 : vector<1x2xf32>
    %99 = arith.cmpf olt, %93, %98 : vector<1x2xf32>
    %cst_31 = arith.constant 3.000000e-01 : f32
    %100 = vector.broadcast %cst_31 : f32 to vector<1x2xf32>
    %101 = arith.mulf %93, %100 : vector<1x2xf32>
    %102 = arith.select %99, %101, %93 : vector<1x2xi1>, vector<1x2xf32>
    %c30 = arith.constant 30 : index
    %c0_32 = arith.constant 0 : index
    %103 = vector.load %arg8[%c30, %c0_32] : memref<32x2xf32, #tpu.memory_space<vmem>>, vector<1x2xf32>
    tpu.vector_store %arg8[%c30, %c0_32], %102 {strides = array<i32>} : memref<32x2xf32, #tpu.memory_space<vmem>>, vector<1x2xf32>,
    %104 = vector.extract_strided_slice %24 {offsets = [31, 0], sizes = [1, 2], strides = [1, 1]} : vector<32x2xf32> to vector<1x2xf32>
    %105 = arith.maximumf %102, %91 : vector<1x2xf32>
    %106 = arith.maximumf %105, %72#0 : vector<1x2xf32>
    %107 = arith.maximumf %106, %81 : vector<1x2xf32>
    %cst_33 = arith.constant 0.699999988 : f32
    %108 = vector.broadcast %cst_33 : f32 to vector<1x2xf32>
    %109 = arith.mulf %108, %107 : vector<1x2xf32>
    %110 = arith.cmpf olt, %104, %109 : vector<1x2xf32>
    %cst_34 = arith.constant 3.000000e-01 : f32
    %111 = vector.broadcast %cst_34 : f32 to vector<1x2xf32>
    %112 = arith.mulf %104, %111 : vector<1x2xf32>
    %113 = arith.select %110, %112, %104 : vector<1x2xi1>, vector<1x2xf32>
    %c31 = arith.constant 31 : index
    %c0_35 = arith.constant 0 : index
    %114 = vector.load %arg8[%c31, %c0_35] : memref<32x2xf32, #tpu.memory_space<vmem>>, vector<1x2xf32>
    tpu.vector_store %arg8[%c31, %c0_35], %113 {strides = array<i32>} : memref<32x2xf32, #tpu.memory_space<vmem>>, vector<1x2xf32>,
    %c0_36 = arith.constant 0 : index
    %c0_37 = arith.constant 0 : index
    %115 = vector.load %arg8[%c0_36, %c0_37] : memref<32x2xf32, #tpu.memory_space<vmem>>, vector<32x2xf32>
    %cst_38 = arith.constant dense<0.000000e+00> : vector<2xf32>
    %116 = vector.multi_reduction <add>, %115, %cst_38 [0] : vector<32x2xf32> to vector<2xf32>
    %117 = vector.shape_cast %116 : vector<2xf32> to vector<1x2xf32>
    %cst_39 = arith.constant 3.125000e-02 : f32
    %118 = vector.broadcast %cst_39 : f32 to vector<1x2xf32>
    %119 = arith.mulf %117, %118 : vector<1x2xf32>
    %120 = vector.broadcast %119 : vector<1x2xf32> to vector<32x2xf32>
    %121 = arith.subf %115, %120 : vector<32x2xf32>
    %122 = arith.mulf %121, %121 : vector<32x2xf32>
    %cst_40 = arith.constant dense<0.000000e+00> : vector<2xf32>
    %123 = vector.multi_reduction <add>, %122, %cst_40 [0] : vector<32x2xf32> to vector<2xf32>
    %124 = vector.shape_cast %123 : vector<2xf32> to vector<1x2xf32>
    %cst_41 = arith.constant 0.0322580636 : f32
    %125 = vector.broadcast %cst_41 : f32 to vector<1x2xf32>
    %126 = arith.mulf %124, %125 : vector<1x2xf32>
    %127 = math.sqrt %126 : vector<1x2xf32>
    %cst_42 = arith.constant 5.000000e-01 : f32
    %128 = vector.broadcast %cst_42 : f32 to vector<1x2xf32>
    %129 = arith.mulf %128, %119 : vector<1x2xf32>
    %130 = arith.cmpf ogt, %127, %129 : vector<1x2xf32>
    %cst_43 = arith.constant dense<0xFF800000> : vector<2xf32>
    %131 = vector.multi_reduction <maximumf>, %115, %cst_43 [0] : vector<32x2xf32> to vector<2xf32>
    %132 = vector.shape_cast %131 : vector<2xf32> to vector<1x2xf32>
    %133 = vector.broadcast %132 : vector<1x2xf32> to vector<32x2xf32>
    %134 = arith.cmpf oeq, %115, %133 : vector<32x2xf32>
    %c32_i32 = arith.constant 32 : i32
    %135 = vector.shape_cast %3 : vector<32x1xi32> to vector<32x1xi32>
    %136 = vector.broadcast %135 : vector<32x1xi32> to vector<32x2xi32>
    %137 = vector.broadcast %c32_i32 : i32 to vector<32x2xi32>
    %138 = arith.select %134, %136, %137 : vector<32x2xi1>, vector<32x2xi32>
    %cst_44 = arith.constant dense<2147483647> : vector<2xi32>
    %139 = vector.multi_reduction <minsi>, %138, %cst_44 [0] : vector<32x2xi32> to vector<2xi32>
    %140 = vector.shape_cast %139 : vector<2xi32> to vector<1x2xi32>
    %141 = vector.broadcast %3 : vector<32x1xi32> to vector<32x2xi32>
    %142 = vector.broadcast %140 : vector<1x2xi32> to vector<32x2xi32>
    %143 = arith.subi %141, %142 : vector<32x2xi32>
    %144 = math.absi %143 : vector<32x2xi32>
    %c32_i32_45 = arith.constant 32 : i32
    %145 = vector.broadcast %c32_i32_45 : i32 to vector<32x2xi32>
    %146 = arith.subi %145, %144 : vector<32x2xi32>
    %147 = arith.minsi %144, %146 : vector<32x2xi32>
    %148 = vector.broadcast %3 : vector<32x1xi32> to vector<32x2xi32>
    %149 = vector.broadcast %140 : vector<1x2xi32> to vector<32x2xi32>
    %150 = arith.cmpi ne, %148, %149 : vector<32x2xi32>
    %c3_i32_46 = arith.constant 3 : i32
    %151 = vector.broadcast %c3_i32_46 : i32 to vector<32x2xi32>
    %152 = arith.cmpi sgt, %147, %151 : vector<32x2xi32>
    %153 = arith.andi %150, %152 : vector<32x2xi1>
    %cst_47 = arith.constant 1.000000e-01 : f32
    %cst_48 = arith.constant 1.000000e+00 : f32
    %154 = vector.broadcast %cst_47 : f32 to vector<32x2xf32>
    %155 = vector.broadcast %cst_48 : f32 to vector<32x2xf32>
    %156 = arith.select %153, %154, %155 : vector<32x2xi1>, vector<32x2xf32>
    %157 = arith.mulf %115, %156 : vector<32x2xf32>
    %158 = vector.shape_cast %130 : vector<1x2xi1> to vector<1x2xi1>
    %159 = vector.broadcast %158 : vector<1x2xi1> to vector<32x2xi1>
    %160 = arith.select %159, %157, %115 : vector<32x2xi1>, vector<32x2xf32>
    %cst_49 = arith.constant dense<0.000000e+00> : vector<2xf32>
    %161 = vector.multi_reduction <add>, %160, %cst_49 [0] : vector<32x2xf32> to vector<2xf32>
    %162 = vector.shape_cast %161 : vector<2xf32> to vector<1x2xf32>
    %cst_50 = arith.constant 1.600000e+00 : f32
    %163 = vector.broadcast %cst_50 : f32 to vector<1x2xf32>
    %164 = arith.cmpf ogt, %162, %163 : vector<1x2xf32>
    %cst_51 = arith.constant 1.000000e-30 : f32
    %165 = vector.broadcast %cst_51 : f32 to vector<1x2xf32>
    %166 = arith.maximumf %162, %165 : vector<1x2xf32>
    %cst_52 = arith.constant 8.000000e-01 : f32
    %167 = vector.broadcast %cst_52 : f32 to vector<1x2xf32>
    %168 = arith.divf %167, %166 : vector<1x2xf32>
    %cst_53 = arith.constant 1.000000e+00 : f32
    %169 = vector.broadcast %cst_53 : f32 to vector<1x2xf32>
    %170 = arith.select %164, %168, %169 : vector<1x2xi1>, vector<1x2xf32>
    %171 = vector.broadcast %170 : vector<1x2xf32> to vector<32x2xf32>
    %172 = arith.mulf %160, %171 : vector<32x2xf32>
    %cst_54 = arith.constant 9.99999997E-7 : f32
    %173 = vector.broadcast %cst_54 : f32 to vector<1x2xf32>
    %174 = arith.cmpf olt, %17, %173 : vector<1x2xf32>
    %175 = vector.shape_cast %174 : vector<1x2xi1> to vector<1x2xi1>
    %176 = vector.broadcast %175 : vector<1x2xi1> to vector<32x2xi1>
    %177 = arith.select %176, %15, %172 : vector<32x2xi1>, vector<32x2xf32>
    %178 = vector.extract_strided_slice %14 {offsets = [32, 0], sizes = [16, 2], strides = [1, 1]} : vector<48x2xf32> to vector<16x2xf32>
    %179 = tpu.concatenate %177, %178 in 0 : vector<32x2xf32>, vector<16x2xf32> -> vector<48x2xf32>
    %180 = vector.extract_strided_slice %179 {offsets = [0, 0], sizes = [32, 2], strides = [1, 1]} : vector<48x2xf32> to vector<32x2xf32>
    %c0_55 = arith.constant 0 : index
    %c0_56 = arith.constant 0 : index
    %181 = vector.load %arg5[%c0_55, %c0_56] : memref<32x2xf32, #tpu.memory_space<vmem>>, vector<32x2xf32>
    tpu.vector_store %arg5[%c0_55, %c0_56], %180 {strides = array<i32>} : memref<32x2xf32, #tpu.memory_space<vmem>>, vector<32x2xf32>,
    return
  }
  func.func @transform_0(%arg0: i32) -> (i32, i32) {
    %c0_i32 = arith.constant 0 : i32
    %c0_i32_0 = arith.constant 0 : i32
    %c0_i32_1 = arith.constant 0 : i32
    return %c0_i32, %c0_i32_0 : i32, i32
  }
  func.func @transform_1(%arg0: i32) -> (i32, i32) {
    %c0_i32 = arith.constant 0 : i32
    %c0_i32_0 = arith.constant 0 : i32
    return %c0_i32, %arg0 : i32, i32
  }
  func.func @transform_2(%arg0: i32) -> (i32, i32) {
    %c0_i32 = arith.constant 0 : i32
    %c0_i32_0 = arith.constant 0 : i32
    return %c0_i32, %arg0 : i32, i32
  }
  func.func @transform_3(%arg0: i32) -> (i32, i32) {
    %c0_i32 = arith.constant 0 : i32
    %c0_i32_0 = arith.constant 0 : i32
    %c0_i32_1 = arith.constant 0 : i32
    return %c0_i32, %c0_i32_0 : i32, i32
  }
  func.func @transform_4(%arg0: i32) -> (i32, i32) {
    %c0_i32 = arith.constant 0 : i32
    %c0_i32_0 = arith.constant 0 : i32
    return %c0_i32, %arg0 : i32, i32
  }
}

</mosaic_0001>

<llo_original>
// kernel: tpu_custom_call.1
$region0: #{tpu_custom_call.1}
  #allocation0 [shape = 'u32[]', space=smem, size = 0x4, offset = 0x4, fixed_abs, tag = 'smem constant byte address 0x4 - core index']
  #allocation1 [shape = 'u32[144,128]{1,0:T(1,128)}', space=vmem, size = 0x12000, scoped, tag = 'internal scratch']
  #allocation2 [shape = 'f32[32,2]{1,0:T(8,128)}', space=vmem, size = 0x4000, scoped, tag = 'scratch operand']
  #allocation3 [shape = 'f32[32,2]{1,0:T(8,128)}', space=vmem, size = 0x4000, scoped, tag = 'scratch operand']
  #allocation4 [shape = 'f32[32,2]{1,0:T(8,128)}', space=vmem, size = 0x4000, scoped, tag = 'scratch operand']
  %s0 = inlined_call_operand.vmem [shape: f32[48,1], index: 0, kind: input, shape index: {}]
  %s1 = inlined_call_operand.vmem [shape: f32[48,2], index: 1, kind: input, shape index: {}]
  %s2 = inlined_call_operand.vmem [shape: f32[48,2], index: 2, kind: input, shape index: {}]
  %s3 = inlined_call_operand.vmem [shape: f32[48,48], index: 3, kind: input, shape index: {}]
  %s4 = inlined_call_operand.vmem [shape: f32[32,2], index: 4, kind: output, shape index: {}]
  %s5 = sld [smem:[#allocation0]]
  $region33: #{tpu_custom_call.1} parent=0
    _
  %s7 = ssub.s32 1, %s5
  %s8 = scalar_select 0, %s7, %s5
  // Predicated region
  $region2: #{tpu_custom_call.1} parent=0 // pred_check
    _
  $region3: #{tpu_custom_call.1} parent=0 // pred_check_branch
    %10 = sbr.rel (0) target = $region5
  $region4: #{tpu_custom_call.1} parent=0 // pred_region
    _
  $region5: #{tpu_custom_call.1} parent=0 // pred_fallthru
    _
  // Predicated region
  $region6: #{tpu_custom_call.1} parent=0 // pred_check
    _
  $region7: #{tpu_custom_call.1} parent=0 // pred_check_branch
    %12 = sbr.rel (0) target = $region9
  $region8: #{tpu_custom_call.1} parent=0 // pred_region
    _
  $region9: #{tpu_custom_call.1} parent=0 // pred_fallthru
    _
  // Predicated region
  $region10: #{tpu_custom_call.1} parent=0 // pred_check
    _
  $region11: #{tpu_custom_call.1} parent=0 // pred_check_branch
    %14 = sbr.rel (0) target = $region13
  $region12: #{tpu_custom_call.1} parent=0 // pred_region
    _
  $region13: #{tpu_custom_call.1} parent=0 // pred_fallthru
    _
  // Predicated region
  $region14: #{tpu_custom_call.1} parent=0 // pred_check
    _
  $region15: #{tpu_custom_call.1} parent=0 // pred_check_branch
    %16 = sbr.rel (0) target = $region17
  $region16: #{tpu_custom_call.1} parent=0 // pred_region
    _
  $region17: #{tpu_custom_call.1} parent=0 // pred_fallthru
    _
  %v17 = vld [vmem:[%s3] sm:$0xff]
  %v18 = vld [vmem:[%s3 + $0x8] sm:$0xff]
  %v19 = vld [vmem:[%s3 + $0x10] sm:$0xff]
  %v20 = vld [vmem:[%s3 + $0x18] sm:$0xff]
  %v21 = vld [vmem:[%s3 + $0x20] sm:$0xff]
  %v22 = vld [vmem:[%s3 + $0x28] sm:$0xff]
  %v23 = vld [vmem:[%s1] sm:$0xff]
  %v24 = vld [vmem:[%s1 + $0x8] sm:$0xff]
  %v25 = vld [vmem:[%s1 + $0x10] sm:$0xff]
  %v26 = vld [vmem:[%s1 + $0x18] sm:$0xff]
  %v27 = vld [vmem:[%s0] sm:$0xff]
  %v28 = vld [vmem:[%s0 + $0x8] sm:$0xff]
  %v29 = vld [vmem:[%s0 + $0x10] sm:$0xff]
  %v30 = vld [vmem:[%s0 + $0x18] sm:$0xff]
  %v31 = vlaneseq
  %v32 = vshrl.u32 %v31, 7
  %v33 = vadd.s32 %v32, 8
  %v34 = vadd.s32 %v32, 16
  %v35 = vadd.s32 %v32, 24
  %v36 = vld [vmem:[%s2] sm:$0xff]
  %v37 = vld [vmem:[%s2 + $0x8] sm:$0xff]
  %v38 = vld [vmem:[%s2 + $0x10] sm:$0xff]
  %v39 = vld [vmem:[%s2 + $0x18] sm:$0xff]
  %v40 = vld [vmem:[%s2 + $0x20] sm:$0xff]
  %v41 = vld [vmem:[%s2 + $0x28] sm:$0xff]
  %vm42 = vcmask 392192
  %v44 = vsel %vm42, %v17, 0
  %v47 = vsel %vm42, %v18, 0
  %v50 = vsel %vm42, %v19, 0
  %v53 = vsel %vm42, %v20, 0
  %v56 = vsel %vm42, %v21, 0
  %v59 = vsel %vm42, %v22, 0
  %61 = vmatprep.subr.mxu0 0.0
  %62 = vmatpush1.msra.mxu0 0.0
  %63 = vmatprep.subr.mxu0 0.0
  %64 = vmatpush1.msra.mxu0 0.0
  %65 = vmatprep.subr.mxu0 0.0
  %66 = vmatpush1.msra.mxu0 0.0
  %67 = vmatprep.subr.mxu0 0.0
  %68 = vmatpush1.msra.mxu0 0.0
  %69 = vmatprep.subr.mxu0 0.0
  %70 = vmatpush1.msra.mxu0 0.0
  %71 = vmatprep.subr.mxu0 0.0
  %72 = vmatpush1.msra.mxu0 0.0
  %73 = vmatprep.subr.mxu0 0.0
  %74 = vmatpush1.msra.mxu0 0.0
  %75 = vmatprep.subr.mxu0 0.0
  %76 = vmatpush1.msra.mxu0 0.0
  %77 = vmatprep.subr.mxu0 0.0
  %78 = vmatpush1.msra.mxu0 0.0
  %79 = vmatprep.subr.mxu0 0.0
  %80 = vmatpush1.msra.mxu0 0.0
  %81 = vmatprep.subr.mxu0 0.0
  %82 = vmatpush1.msra.mxu0 %v41
  %83 = vmatprep.subr.mxu0 0.0
  %84 = vmatpush1.msra.mxu0 %v40
  %85 = vmatprep.subr.mxu0 0.0
  %86 = vmatpush1.msra.mxu0 %v39
  %87 = vmatprep.subr.mxu0 0.0
  %88 = vmatpush1.msra.mxu0 %v38
  %89 = vmatprep.subr.mxu0 0.0
  %90 = vmatpush1.msra.mxu0 %v37
  %91 = vmatprep.subr.mxu0 0.0
  %92 = vmatpush1.msra.mxu0 %v36
  %93 = vmatprep.subr.mxu0 0.0
  %94 = vmatpush2.msra.mxu0 0.0
  %95 = vmatprep.subr.mxu0 0.0
  %96 = vmatpush2.msra.mxu0 0.0
  %97 = vmatprep.subr.mxu0 0.0
  %98 = vmatpush2.msra.mxu0 0.0
  %99 = vmatprep.subr.mxu0 0.0
  %100 = vmatpush2.msra.mxu0 0.0
  %101 = vmatprep.subr.mxu0 0.0
  %102 = vmatpush2.msra.mxu0 0.0
  %103 = vmatprep.subr.mxu0 0.0
  %104 = vmatpush2.msra.mxu0 0.0
  %105 = vmatprep.subr.mxu0 0.0
  %106 = vmatpush2.msra.mxu0 0.0
  %107 = vmatprep.subr.mxu0 0.0
  %108 = vmatpush2.msra.mxu0 0.0
  %109 = vmatprep.subr.mxu0 0.0
  %110 = vmatpush2.msra.mxu0 0.0
  %111 = vmatprep.subr.mxu0 0.0
  %112 = vmatpush2.msra.mxu0 0.0
  %113 = vmatprep.subr.mxu0 0.0
  %114 = vmatpush2.msra.mxu0 0.0
  %115 = vmatprep.subr.mxu0 0.0
  %116 = vmatpush2.msra.mxu0 0.0
  %117 = vmatprep.subr.mxu0 0.0
  %118 = vmatpush2.msra.mxu0 0.0
  %119 = vmatprep.subr.mxu0 0.0
  %120 = vmatpush2.msra.mxu0 0.0
  %121 = vmatprep.subr.mxu0 0.0
  %122 = vmatpush2.msra.mxu0 0.0
  %123 = vmatprep.subr.mxu0 0.0
  %124 = vmatpush2.msra.mxu0 0.0
  %125 = vmatprep.mubr.f32.mxu0 0.0
  %126 = vmatmul.mubr.f32.gmra.mxu0 %v44
  %v127 = vpop.f32.mrf.mxu0
  %v128 = vadd.f32 %v23, %v127
  %v129 = vpop.f32.mrf.mxu0
  %130 = vmatprep.mubr.f32.mxu0 0.0
  %131 = vmatmul.mubr.f32.gmra.mxu0 %v47
  %v132 = vpop.f32.mrf.mxu0
  %v133 = vadd.f32 %v24, %v132
  %v134 = vpop.f32.mrf.mxu0
  %135 = vmatprep.mubr.f32.mxu0 0.0
  %136 = vmatmul.mubr.f32.gmra.mxu0 %v50
  %v137 = vpop.f32.mrf.mxu0
  %v138 = vadd.f32 %v25, %v137
  %v139 = vpop.f32.mrf.mxu0
  %140 = vmatprep.mubr.f32.mxu0 0.0
  %141 = vmatmul.mubr.f32.gmra.mxu0 %v53
  %v142 = vpop.f32.mrf.mxu0
  %v143 = vadd.f32 %v26, %v142
  %v144 = vpop.f32.mrf.mxu0
  %145 = vmatprep.mubr.f32.mxu0 0.0
  %146 = vmatmul.mubr.f32.gmra.mxu0 %v56
  %v147 = vpop.f32.mrf.mxu0
  %v148 = vpop.f32.mrf.mxu0
  %149 = vmatprep.mubr.f32.mxu0 0.0
  %150 = vmatmul.mubr.f32.gmra.mxu0 %v59
  %v151 = vpop.f32.mrf.mxu0
  %v152 = vpop.f32.mrf.mxu0
  %153 = vdwg.mxu0
  %v154 = vmax.f32 %v128, 0.0
  %v155 = vmax.f32 %v133, 0.0
  %v156 = vmax.f32 %v138, 0.0
  %v157 = vmax.f32 %v143, 0.0
  %v158 = vsub.f32 %v154, %v36
  %v159 = vsub.f32 %v155, %v37
  %v160 = vsub.f32 %v156, %v38
  %v161 = vsub.f32 %v157, %v39
  %163 = vset.pattern.permute.xlu0 0
  %164 = vperm.xlu0 %163, %v27
  %v165 = vpop.permute.xlu0 %164
  %168 = vset.pattern.permute.xlu0 0
  %169 = vperm.xlu0 %168, %v28
  %v170 = vpop.permute.xlu0 %169
  %173 = vset.pattern.permute.xlu0 0
  %174 = vperm.xlu0 %173, %v29
  %v175 = vpop.permute.xlu0 %174
  %178 = vset.pattern.permute.xlu0 0
  %179 = vperm.xlu0 %178, %v30
  %v180 = vpop.permute.xlu0 %179
  %v182 = vmul.f32 %v165, %v158
  %v183 = vmul.f32 %v170, %v159
  %v184 = vmul.f32 %v175, %v160
  %v185 = vmul.f32 %v180, %v161
  %v186 = vadd.f32 %v36, %v182
  %v187 = vadd.f32 %v37, %v183
  %v188 = vadd.f32 %v38, %v184
  %v189 = vadd.f32 %v39, %v185
  %v190 = vmax.f32 %v186, 0.0
  %v191 = vmax.f32 %v187, 0.0
  %v192 = vmax.f32 %v188, 0.0
  %v193 = vmax.f32 %v189, 0.0
  %vm194 = vcmask 15360
  %v195 = vsel %vm194, %v190, -inf
  %v196 = vsel %vm194, %v191, -inf
  %v197 = vsel %vm194, %v192, -inf
  %v198 = vsel %vm194, %v193, -inf
  %v199 = vmax.f32 %v195, %v196
  %v200 = vmax.f32 %v197, %v198
  %v201 = vmax.f32 %v199, %v200
  %v202 = vrot.slane %v201, 4
  %v203 = vmax.f32 %v201, %v202
  %v204 = vrot.slane %v203, 2
  %v205 = vmax.f32 %v203, %v204
  %v206 = vrot.slane %v205, 1
  %v207 = vmax.f32 %v205, %v206
  %v208 = vmul.f32 %v207, 0.25
  %vm209 = vcmp.gt.f32.partialorder %v190, %v208
  %vm210 = vcmp.gt.f32.partialorder %v191, %v208
  %vm211 = vcmp.gt.f32.partialorder %v192, %v208
  %vm212 = vcmp.gt.f32.partialorder %v193, %v208
  %v213 = vmul.f32 %v190, 0.05
  %v214 = vmul.f32 %v191, 0.05
  %v215 = vmul.f32 %v192, 0.05
  %v216 = vmul.f32 %v193, 0.05
  %v217 = vsel %vm209, %v190, %v213
  %v218 = vsel %vm210, %v191, %v214
  %v219 = vsel %vm211, %v192, %v215
  %v220 = vsel %vm212, %v193, %v216
  %vm225 = vcmask 1046528
  %v226 = vrot.slane %v217, 1
  %v227 = vrot.slane %v218, 1
  %v228 = vsel %vm225, %v226, %v227
  %v229 = vrot.slane %v219, 1
  %v230 = vsel %vm225, %v227, %v229
  %v231 = vrot.slane %v220, 1
  %v232 = vsel %vm225, %v229, %v231
  %v237 = vmax.f32 %v217, %v228
  %v238 = vmax.f32 %v218, %v230
  %v239 = vmax.f32 %v219, %v232
  %v240 = vmax.f32 %v220, %v231
  %vm241 = vcmask 1045504
  %v242 = vrot.slane %v217, 2
  %v243 = vrot.slane %v218, 2
  %v244 = vsel %vm241, %v242, %v243
  %v245 = vrot.slane %v219, 2
  %v246 = vsel %vm241, %v243, %v245
  %v247 = vrot.slane %v220, 2
  %v248 = vsel %vm241, %v245, %v247
  %v253 = vmax.f32 %v237, %v244
  %v254 = vmax.f32 %v238, %v246
  %v255 = vmax.f32 %v239, %v248
  %v256 = vmax.f32 %v240, %v247
  %257 = vst.msk [vmem:[#allocation2] sm:$0xff] %vm194, %v217
  %258 = vst.msk [vmem:[#allocation2 + $0x8] sm:$0xff] %vm194, %v218
  %259 = vst.msk [vmem:[#allocation2 + $0x10] sm:$0xff] %vm194, %v219
  %260 = vst.msk [vmem:[#allocation2 + $0x18] sm:$0xff] %vm194, %v220
  %vm261 = vcmask 15361
  %262 = vst.msk [vmem:[#allocation3 - $0x1] sm:$0xfe] %vm261, %v253
  %263 = vst.msk [vmem:[#allocation3 + $0x7] sm:$0xff] %vm194, %v254
  %264 = vst.msk [vmem:[#allocation3 + $0xf] sm:$0xff] %vm194, %v255
  %vm265 = vcmask 13312
  %266 = vst.msk [vmem:[#allocation3 + $0x17] sm:$0x3f] %vm265, %v256
  %v267 = vrot.slane %v220, 7
  %v269 = vmax.f32 %v220, %v267
  %v270 = vrot.slane %v220, 6
  %v272 = vmax.f32 %v269, %v270
  %v274 = vrot.slane %v253, 2
  %v276 = vmax.f32 %v272, %v274
  %v277 = vmul.f32 %v276, 0.7
  %v279 = vrot.slane %v277, 7
  %vm281 = vcmp.lt.f32.partialorder %v217, %v279
  %v282 = vmul.f32 %v217, 0.3
  %v283 = vsel %vm281, %v282, %v217
  %vm284 = vcmask 8192
  %285 = vst.msk [vmem:[#allocation4] sm:$0x1] %vm284, %v283
  %v286 = vmax.f32 %v283, %v267
  %v287 = vmax.f32 %v286, %v270
  %v288 = vmax.f32 %v287, %v274
  %v289 = vmul.f32 %v288, 0.7
  %v291 = vrot.slane %v289, 7
  %vm293 = vcmp.lt.f32.partialorder %v217, %v291
  %v294 = vsel %vm293, %v282, %v217
  %vm295 = vcmask 9217
  %296 = vst.msk [vmem:[#allocation4] sm:$0x2] %vm295, %v294
  %v298 = vrot.slane %v283, 7
  %v300 = vmax.f32 %v294, %v298
  %v301 = vmax.f32 %v300, %v270
  %v302 = vmax.f32 %v301, %v274
  %v303 = vmul.f32 %v302, 0.7
  %v305 = vrot.slane %v303, 7
  %vm307 = vcmp.lt.f32.partialorder %v217, %v305
  %v308 = vsel %vm307, %v282, %v217
  %vm309 = vcmask 10242
  %310 = vst.msk [vmem:[#allocation4] sm:$0x4] %vm309, %v308
  %v312 = vrot.slane %v308, 2
  %v315 = vrot.slane %v294, 1
  loop: start=3, step=1, limit=29
  $region18: #{tpu_custom_call.1} parent=0 // loop_pre_header
    _
  $region19: #{tpu_custom_call.1} parent=0 // loop_header
    %s318 = sphi 3, %s322
    %p319 = scmp.ge.s32.totalorder %s318, 29
    %v323 = vphi %v312, %v336
    %v324 = vphi %v315, %v323
    %v325 = vphi %v283, %v324
  $region20: #{tpu_custom_call.1} parent=0 // loop_header_branch
    %321 = sbr.rel (%p319) target = $region24
  $region21: #{tpu_custom_call.1} parent=0 // loop_body
    %s326 = scalar_lea.vmem [#allocation2], %s318
    %v327 = vld [vmem:[%s326] sm:$0x1]
    %s328 = scalar_lea.vmem [#allocation3], %s318
    %v329 = vld [vmem:[%s328] sm:$0x1]
    %v330 = vmax.f32 %v323, %v324
    %v331 = vmax.f32 %v330, %v325
    %v332 = vmax.f32 %v331, %v329
    %v333 = vmul.f32 %v332, 0.7
    %vm334 = vcmp.lt.f32.partialorder %v327, %v333
    %v335 = vmul.f32 %v327, 0.3
    %v336 = vsel %vm334, %v335, %v327
    %s337 = scalar_lea.vmem [#allocation4], %s318
    %338 = vst.msk [vmem:[%s337] sm:$0x1] %vm284, %v336
  $region22: #{tpu_custom_call.1} parent=0 // loop_footer
    %s322 = sadd.s32 1, %s318
  $region23: #{tpu_custom_call.1} parent=0 // loop_footer_branch
    %317 = sbr.rel target = $region19
  $region24: #{tpu_custom_call.1} parent=0 // loop_exit
    _
  %v339 = vrot.slane %v283, 1
  %v341 = vmax.f32 %v269, %v339
  %v342 = vmax.f32 %v286, %v315
  %v343 = vrot.slane %v308, 1
  %v345 = vmax.f32 %v300, %v343
  %v346 = vmax.f32 %v323, %v324
  %v347 = vmax.f32 %v346, %v325
  %v349 = vrot.slane %v341, 7
  %v351 = vmax.f32 %v347, %v349
  %v352 = vmul.f32 %v351, 0.7
  %v354 = vrot.slane %v352, 3
  %vm356 = vcmp.lt.f32.partialorder %v220, %v354
  %v357 = vmul.f32 %v220, 0.3
  %v358 = vsel %vm356, %v357, %v220
  %vm359 = vcmask 13317
  %360 = vst.msk [vmem:[#allocation4 + $0x18] sm:$0x20] %vm359, %v358
  %v362 = vrot.slane %v323, 3
  %v364 = vmax.f32 %v358, %v362
  %v366 = vrot.slane %v324, 3
  %v368 = vmax.f32 %v364, %v366
  %v370 = vrot.slane %v342, 3
  %v372 = vmax.f32 %v368, %v370
  %v373 = vmul.f32 %v372, 0.7
  %v375 = vrot.slane %v373, 7
  %vm377 = vcmp.lt.f32.partialorder %v220, %v375
  %v378 = vsel %vm377, %v357, %v220
  %vm379 = vcmask 14342
  %380 = vst.msk [vmem:[#allocation4 + $0x18] sm:$0x40] %vm379, %v378
  %v382 = vrot.slane %v358, 7
  %v384 = vmax.f32 %v378, %v382
  %v385 = vrot.slane %v323, 2
  %v387 = vmax.f32 %v384, %v385
  %v389 = vrot.slane %v345, 3
  %v391 = vmax.f32 %v387, %v389
  %v392 = vmul.f32 %v391, 0.7
  %v394 = vrot.slane %v392, 7
  %vm396 = vcmp.lt.f32.partialorder %v220, %v394
  %v397 = vsel %vm396, %v357, %v220
  %vm398 = vcmask 15367
  %399 = vst.msk [vmem:[#allocation4 + $0x18] sm:$0x80] %vm398, %v397
  %v400 = vld [vmem:[#allocation4] sm:$0xff]
  %v401 = vld [vmem:[#allocation4 + $0x8] sm:$0xff]
  %v402 = vld [vmem:[#allocation4 + $0x10] sm:$0xff]
  %v403 = vld [vmem:[#allocation4 + $0x18] sm:$0xff]
  %v404 = vsel %vm194, %v400, 0.0
  %v405 = vsel %vm194, %v401, 0.0
  %v406 = vadd.f32 %v404, %v405
  %v407 = vsel %vm194, %v402, 0.0
  %v408 = vadd.f32 %v406, %v407
  %v409 = vsel %vm194, %v403, 0.0
  %v410 = vadd.f32 %v408, %v409
  %v411 = vrot.slane %v410, 4
  %v412 = vadd.f32 %v410, %v411
  %v413 = vrot.slane %v412, 2
  %v414 = vadd.f32 %v412, %v413
  %v415 = vrot.slane %v414, 1
  %v416 = vadd.f32 %v414, %v415
  %v417 = vmul.f32 %v416, 0.03125
  %v418 = vsub.f32 %v400, %v417
  %v419 = vsub.f32 %v401, %v417
  %v420 = vsub.f32 %v402, %v417
  %v421 = vsub.f32 %v403, %v417
  %v422 = vmul.f32 %v418, %v418
  %v423 = vmul.f32 %v419, %v419
  %v424 = vmul.f32 %v420, %v420
  %v425 = vmul.f32 %v421, %v421
  %v426 = vsel %vm194, %v422, 0.0
  %v427 = vsel %vm194, %v423, 0.0
  %v428 = vadd.f32 %v426, %v427
  %v429 = vsel %vm194, %v424, 0.0
  %v430 = vadd.f32 %v428, %v429
  %v431 = vsel %vm194, %v425, 0.0
  %v432 = vadd.f32 %v430, %v431
  %v433 = vrot.slane %v432, 4
  %v434 = vadd.f32 %v432, %v433
  %v435 = vrot.slane %v434, 2
  %v436 = vadd.f32 %v434, %v435
  %v437 = vrot.slane %v436, 1
  %v438 = vadd.f32 %v436, %v437
  %v439 = vmul.f32 %v438, 0.032258064
  %v440 = vrsqrt.pop %v439
  %v441 = vmul.f32 %v439, %v440
  %vm442 = vcmp.eq.f32.partialorder %v439, inf
  %v443 = vsel %vm442, %v439, %v441
  %vm444 = vcmp.eq.f32.partialorder %v439, 0.0
  %v445 = vand.u32 %v439, 2147483648
  %v446 = vsel %vm444, %v445, %v443
  %v447 = vmul.f32 %v417, 0.5
  %vm448 = vcmp.gt.f32.partialorder %v446, %v447
  %v449 = vsel %vm194, %v400, -inf
  %v450 = vsel %vm194, %v401, -inf
  %v451 = vsel %vm194, %v402, -inf
  %v452 = vsel %vm194, %v403, -inf
  %v453 = vmax.f32 %v449, %v450
  %v454 = vmax.f32 %v451, %v452
  %v455 = vmax.f32 %v453, %v454
  %v456 = vrot.slane %v455, 4
  %v457 = vmax.f32 %v455, %v456
  %v458 = vrot.slane %v457, 2
  %v459 = vmax.f32 %v457, %v458
  %v460 = vrot.slane %v459, 1
  %v461 = vmax.f32 %v459, %v460
  %vm462 = vcmp.eq.f32.partialorder %v400, %v461
  %vm463 = vcmp.eq.f32.partialorder %v401, %v461
  %vm464 = vcmp.eq.f32.partialorder %v402, %v461
  %vm465 = vcmp.eq.f32.partialorder %v403, %v461
  %v466 = vsel %vm462, %v32, 32
  %v467 = vsel %vm463, %v33, 32
  %v468 = vsel %vm464, %v34, 32
  %v469 = vsel %vm465, %v35, 32
  %v470 = vsel %vm194, %v466, 2147483647
  %v471 = vsel %vm194, %v467, 2147483647
  %v472 = vsel %vm194, %v468, 2147483647
  %v473 = vsel %vm194, %v469, 2147483647
  %vm474 = vcmp.lt.s32.totalorder %v470, %v471
  %v475 = vsel %vm474, %v470, %v471
  %vm476 = vcmp.lt.s32.totalorder %v472, %v473
  %v477 = vsel %vm476, %v472, %v473
  %vm478 = vcmp.lt.s32.totalorder %v475, %v477
  %v479 = vsel %vm478, %v475, %v477
  %v480 = vrot.slane %v479, 4
  %vm481 = vcmp.lt.s32.totalorder %v479, %v480
  %v482 = vsel %vm481, %v479, %v480
  %v483 = vrot.slane %v482, 2
  %vm484 = vcmp.lt.s32.totalorder %v482, %v483
  %v485 = vsel %vm484, %v482, %v483
  %v486 = vrot.slane %v485, 1
  %vm487 = vcmp.lt.s32.totalorder %v485, %v486
  %v488 = vsel %vm487, %v485, %v486
  %v489 = vsub.s32 %v32, %v488
  %v490 = vsub.s32 %v33, %v488
  %v491 = vsub.s32 %v34, %v488
  %v492 = vsub.s32 %v35, %v488
  %vm493 = vcmp.lt.s32.totalorder %v489, 0
  %v494 = vsub.s32 0, %v489
  %v495 = vsel %vm493, %v494, %v489
  %vm496 = vcmp.lt.s32.totalorder %v490, 0
  %v497 = vsub.s32 0, %v490
  %v498 = vsel %vm496, %v497, %v490
  %vm499 = vcmp.lt.s32.totalorder %v491, 0
  %v500 = vsub.s32 0, %v491
  %v501 = vsel %vm499, %v500, %v491
  %vm502 = vcmp.lt.s32.totalorder %v492, 0
  %v503 = vsub.s32 0, %v492
  %v504 = vsel %vm502, %v503, %v492
  %v505 = vsub.s32 32, %v495
  %v506 = vsub.s32 32, %v498
  %v507 = vsub.s32 32, %v501
  %v508 = vsub.s32 32, %v504
  %vm509 = vcmp.lt.s32.totalorder %v495, %v505
  %v510 = vsel %vm509, %v495, %v505
  %vm511 = vcmp.lt.s32.totalorder %v498, %v506
  %v512 = vsel %vm511, %v498, %v506
  %vm513 = vcmp.lt.s32.totalorder %v501, %v507
  %v514 = vsel %vm513, %v501, %v507
  %vm515 = vcmp.lt.s32.totalorder %v504, %v508
  %v516 = vsel %vm515, %v504, %v508
  %vm517 = vcmp.ne.s32.totalorder %v32, %v488
  %vm518 = vcmp.ne.s32.totalorder %v33, %v488
  %vm519 = vcmp.ne.s32.totalorder %v34, %v488
  %vm520 = vcmp.ne.s32.totalorder %v35, %v488
  %vm521 = vcmp.gt.s32.totalorder %v510, 3
  %vm522 = vcmp.gt.s32.totalorder %v512, 3
  %vm523 = vcmp.gt.s32.totalorder %v514, 3
  %vm524 = vcmp.gt.s32.totalorder %v516, 3
  %vm525 = vmand %vm517, %vm521
  %vm526 = vmand %vm518, %vm522
  %vm527 = vmand %vm519, %vm523
  %vm528 = vmand %vm520, %vm524
  %v529 = vsel %vm525, 0.1, 1.0
  %v530 = vsel %vm526, 0.1, 1.0
  %v531 = vsel %vm527, 0.1, 1.0
  %v532 = vsel %vm528, 0.1, 1.0
  %v533 = vmul.f32 %v400, %v529
  %v534 = vmul.f32 %v401, %v530
  %v535 = vmul.f32 %v402, %v531
  %v536 = vmul.f32 %v403, %v532
  %v537 = vsel %vm448, 1, 0
  %vm538 = vcmp.eq.s32.totalorder %v537, 1
  %v539 = vsel %vm538, %v533, %v400
  %v540 = vsel %vm538, %v534, %v401
  %v541 = vsel %vm538, %v535, %v402
  %v542 = vsel %vm538, %v536, %v403
  %v543 = vsel %vm194, %v539, 0.0
  %v544 = vsel %vm194, %v540, 0.0
  %v545 = vadd.f32 %v543, %v544
  %v546 = vsel %vm194, %v541, 0.0
  %v547 = vadd.f32 %v545, %v546
  %v548 = vsel %vm194, %v542, 0.0
  %v549 = vadd.f32 %v547, %v548
  %v550 = vrot.slane %v549, 4
  %v551 = vadd.f32 %v549, %v550
  %v552 = vrot.slane %v551, 2
  %v553 = vadd.f32 %v551, %v552
  %v554 = vrot.slane %v553, 1
  %v555 = vadd.f32 %v553, %v554
  %vm556 = vcmp.gt.f32.partialorder %v555, 1.6
  %v557 = vmax.f32 %v555, 1e-30
  %v558 = vrcp.pop %v557
  %v559 = vmul.f32 0.8, %v558
  %v560 = vsel %vm556, %v559, 1.0
  %v561 = vmul.f32 %v539, %v560
  %v562 = vmul.f32 %v540, %v560
  %v563 = vmul.f32 %v541, %v560
  %v564 = vmul.f32 %v542, %v560
  %vm565 = vcmp.lt.f32.partialorder %v207, 1e-06
  %v566 = vsel %vm565, 1, 0
  %vm567 = vcmp.eq.s32.totalorder %v566, 1
  %v568 = vsel %vm567, %v190, %v561
  %v569 = vsel %vm567, %v191, %v562
  %v570 = vsel %vm567, %v192, %v563
  %v571 = vsel %vm567, %v193, %v564
  %572 = vst.msk [vmem:[%s4] sm:$0xff] %vm194, %v568
  %573 = vst.msk [vmem:[%s4 + $0x8] sm:$0xff] %vm194, %v569
  %574 = vst.msk [vmem:[%s4 + $0x10] sm:$0xff] %vm194, %v570
  %575 = vst.msk [vmem:[%s4 + $0x18] sm:$0xff] %vm194, %v571
  // Predicated region
  $region25: #{tpu_custom_call.1} parent=0 // pred_check
    _
  $region26: #{tpu_custom_call.1} parent=0 // pred_check_branch
    %577 = sbr.rel (0) target = $region28
  $region27: #{tpu_custom_call.1} parent=0 // pred_region
    _
  $region28: #{tpu_custom_call.1} parent=0 // pred_fallthru
    _
  // Predicated region
  $region29: #{tpu_custom_call.1} parent=0 // pred_check
    _
  $region30: #{tpu_custom_call.1} parent=0 // pred_check_branch
    %579 = sbr.rel (0) target = $region32
  $region31: #{tpu_custom_call.1} parent=0 // pred_region
    _
  $region32: #{tpu_custom_call.1} parent=0 // pred_fallthru
    _

</llo_original>
